<compile_context>
chip_gen: v7x
topology: tpu7x:2x2x1
jax: 0.10.0
libtpu: 0.0.40
codegen_flags: <defaults>
</compile_context>

<pallas_src>
import functools

import jax
import jax.numpy as jnp
from jax.experimental import pallas as pl
from jax.experimental.pallas import tpu as pltpu

_VMEM_TILE_BUDGET = 24 * 1024 * 1024   # total bytes for (staging buf + 2x output block)
_VMEM_LIMIT_BYTES = 32 * 1024 * 1024   # explicit scoped-VMEM limit, safe on v5e/v6e/v7x
_MIN_DMA_ROW_BYTES = 512               # below this, W-crop at DMA level is inefficient
_MAX_TBC = 2048                        # sanity cap on planes per block


def _largest_divisor_le(n, cap):
    cap = max(1, min(cap, n))
    for d in range(cap, 0, -1):
        if n % d == 0:
            return d
    return 1


def _center_crop_kernel(x_hbm, o_ref, vbuf,
                        *, tbc, th, n_rt, sth, stw, out_h, out_w, dma_crop_w):
    # x_hbm : (BC, H, W) raw HBM ref (memory_space=pl.ANY)
    # o_ref : (tbc, th, out_w) pipelined VMEM output block
    # vbuf  : (tbc, th, w_fetch) VMEM staging buffer
    W = x_hbm.shape[2]
    i = pl.program_id(0)                        # batch*channel block
    r = pl.program_id(1)                        # row tile within the crop window
    base_bc = pl.multiple_of(i * tbc, tbc)
    row0 = sth if n_rt == 1 else sth + r * th   # static in the common (untiled) case
    w_slice = pl.ds(stw, out_w) if dma_crop_w else pl.ds(0, W)

    def fetch(rows):
        src = x_hbm.at[pl.ds(base_bc, tbc), pl.ds(row0, rows), w_slice]
        dst = vbuf if rows == th else vbuf.at[:, pl.ds(0, rows)]
        pltpu.sync_copy(src, dst)               # DMA only the cropped bytes

    rem = out_h - (n_rt - 1) * th               # rows in the last row tile (static)
    if rem == th:                               # row tiles divide evenly (incl. n_rt == 1)
        fetch(th)
    else:
        @pl.when(r < n_rt - 1)
        def _():
            fetch(th)

        @pl.when(r == n_rt - 1)
        def _():
            fetch(rem)                          # partial block: writeback is clipped

    if dma_crop_w:
        o_ref[...] = vbuf[...]
    else:
        # Narrow crop: crop W here (cheap lane shift on a small VMEM tile).
        o_ref[...] = vbuf[:, :, stw:stw + out_w]


def center_crop(x, size):
    """Pallas TPU center crop of an NCHW tensor (module's slicing semantics)."""
    B, C, H, W = x.shape
    if size // 2 > min(H // 2, W // 2):
        raise ValueError(f"crop size {size} does not fit inside spatial dims ({H}, {W})")
    ch, cw = H // 2, W // 2
    sth, stw = ch - size // 2, cw - size // 2
    out_h = out_w = 2 * (size // 2)             # matches x[..., sth:edh, stw:edw]
    if out_h == 0:
        return jnp.zeros((B, C, 0, 0), x.dtype)

    BC = B * C
    x2 = x.reshape(BC, H, W)                    # free reshape (merges leading dims)
    itemsize = x.dtype.itemsize

    # Crop W at the DMA level only when each cropped row is long enough to keep
    # strided-DMA efficiency; otherwise fetch full rows, crop W in VMEM.
    dma_crop_w = (out_w == W) or (out_w * itemsize >= _MIN_DMA_ROW_BYTES)
    w_fetch = out_w if dma_crop_w else W

    out_plane = out_h * out_w * itemsize        # per plane: output block (double-buffered)
    buf_plane = out_h * w_fetch * itemsize      # per plane: staging buffer
    per_plane = 2 * out_plane + buf_plane

    if per_plane <= _VMEM_TILE_BUDGET:
        # Whole cropped planes per step; pack as many planes as the VMEM budget
        # allows, but keep >= ~4 grid steps when BC permits (v7x megacore).
        th, n_rt = out_h, 1
        cap = min(_MAX_TBC, _VMEM_TILE_BUDGET // per_plane)
        cap = min(cap, max(1, BC // min(4, BC)))
        tbc = _largest_divisor_le(BC, cap)
    else:
        # Fallback: one cropped plane exceeds the budget -- tile its rows.
        tbc = 1
        per_row = (2 * out_w + w_fetch) * itemsize
        th = max(8, (_VMEM_TILE_BUDGET // per_row) // 8 * 8)   # multiple of 8
        th = min(th, out_h)
        n_rt = pl.cdiv(out_h, th)

    grid = (BC // tbc, n_rt)

    kernel = functools.partial(
        _center_crop_kernel,
        tbc=tbc, th=th, n_rt=n_rt, sth=sth, stw=stw,
        out_h=out_h, out_w=out_w, dma_crop_w=dma_crop_w)

    out = pl.pallas_call(
        kernel,
        out_shape=jax.ShapeDtypeStruct((BC, out_h, out_w), x.dtype),
        grid=grid,
        in_specs=[pl.BlockSpec(memory_space=pl.ANY)],   # stay in HBM; we DMA the crop
        out_specs=pl.BlockSpec((tbc, th, out_w), lambda i, r: (i, r, 0)),
        scratch_shapes=[pltpu.VMEM((tbc, th, w_fetch), x.dtype)],
        compiler_params=pltpu.CompilerParams(
            dimension_semantics=("parallel", "parallel"),
            vmem_limit_bytes=_VMEM_LIMIT_BYTES),
    )(x2)

    return out.reshape(B, C, out_h, out_w)


if __name__ == "__main__":
    # Small deterministic example: B=2, C=4, H=W=16, crop size=8 -> (2,4,8,8).
    key = jax.random.PRNGKey(0)
    x = jax.random.normal(key, (2, 4, 16, 16), jnp.float32)
    size = 8

    fwd = jax.jit(functools.partial(center_crop, size=size))
    y = fwd(x)
    jax.block_until_ready(y)

    # Pure-JAX reference with identical slicing semantics.
    B, C, H, W = x.shape
    ch, cw = H // 2, W // 2
    ref = x[:, :, ch - size // 2: ch + size // 2, cw - size // 2: cw + size // 2]

    assert y.shape == ref.shape == (2, 4, 8, 8), (y.shape, ref.shape)
    assert bool(jnp.all(jnp.isfinite(y)))
    assert jnp.allclose(y, ref), "Pallas center crop mismatch vs reference"
    print("KERNEL_OK")
</pallas_src>

<mosaic_0001>
module attributes {stable_mosaic.version = 11 : i64} {
  func.func @_center_crop_kernel(%arg0: i32, %arg1: i32, %arg2: memref<8x16x16xf32, #tpu.memory_space<any>>, %arg3: memref<2x8x8xf32, #tpu.memory_space<vmem>>, %arg4: memref<2x8x16xf32, #tpu.memory_space<vmem>>) attributes {dimension_semantics = [#tpu.dimension_semantics<parallel>, #tpu.dimension_semantics<parallel>], iteration_bounds = array<i64: 4, 1>, scalar_prefetch = 0 : i64, scratch_operands = 1 : i64, tpu.core_type = #tpu.core_type<tc>, window_params = [{}, {transform_indices = @transform_1, window_bounds = array<i64: 2, 8, 8>}]} {
    %c2_i32 = arith.constant 2 : i32
    %0 = arith.muli %arg0, %c2_i32 : i32
    %1 = tpu.assume_multiple %0, 2 : i32
    "tpu.region"() ({
      %4 = tpu.sem_alloc : memref<!tpu.dma_semaphore, #tpu.memory_space<semaphore_mem>>
      %c4_i32 = arith.constant 4 : i32
      %c0_i32 = arith.constant 0 : i32
      %5 = tpu.memref_slice %arg2[%1, %c4_i32, %c0_i32] : memref<8x16x16xf32, #tpu.memory_space<any>> -> memref<2x8x16xf32, #tpu.memory_space<any>>
      tpu.enqueue_dma source(%5 : memref<2x8x16xf32, #tpu.memory_space<any>>) target(%arg4 : memref<2x8x16xf32, #tpu.memory_space<vmem>>) target_semaphore(%4 : memref<!tpu.dma_semaphore, #tpu.memory_space<semaphore_mem>>)
      %c4_i32_4 = arith.constant 4 : i32
      %c0_i32_5 = arith.constant 0 : i32
      %6 = tpu.memref_slice %arg2[%1, %c4_i32_4, %c0_i32_5] : memref<8x16x16xf32, #tpu.memory_space<any>> -> memref<2x8x16xf32, #tpu.memory_space<any>>
      tpu.wait_dma2 semaphore(%4 : memref<!tpu.dma_semaphore, #tpu.memory_space<semaphore_mem>>) src(%6 : memref<2x8x16xf32, #tpu.memory_space<any>>) dst(%arg4 : memref<2x8x16xf32, #tpu.memory_space<vmem>>)
      tpu.yield
    }) : () -> ()
    %c0 = arith.constant 0 : index
    %c0_0 = arith.constant 0 : index
    %c4 = arith.constant 4 : index
    %2 = vector.load %arg4[%c0, %c0_0, %c4] : memref<2x8x16xf32, #tpu.memory_space<vmem>>, vector<2x8x8xf32>
    %c0_1 = arith.constant 0 : index
    %c0_2 = arith.constant 0 : index
    %c0_3 = arith.constant 0 : index
    %3 = vector.load %arg3[%c0_1, %c0_2, %c0_3] : memref<2x8x8xf32, #tpu.memory_space<vmem>>, vector<2x8x8xf32>
    tpu.vector_store %arg3[%c0_1, %c0_2, %c0_3], %2 {strides = array<i32>} : memref<2x8x8xf32, #tpu.memory_space<vmem>>, vector<2x8x8xf32>,
    return
  }
  func.func @transform_1(%arg0: i32, %arg1: i32) -> (i32, i32, i32) {
    %c0_i32 = arith.constant 0 : i32
    %c0_i32_0 = arith.constant 0 : i32
    return %arg0, %arg1, %c0_i32 : i32, i32, i32
  }
}

</mosaic_0001>

<llo_original>
// kernel: center_crop.1
$region0: #{center_crop.1}
  #allocation0 [shape = 'u32[]', space=smem, size = 0x4, offset = 0x4, fixed_abs, tag = 'smem constant byte address 0x4 - core index']
  #allocation1 [shape = 'u32[144,128]{1,0:T(1,128)}', space=vmem, size = 0x12000, scoped, tag = 'internal scratch']
  #allocation2 [shape = 'f32[2,8,16]{2,1,0:T(8,128)}', space=vmem, size = 0x2000, scoped, tag = 'scratch operand']
  #allocation6 [shape = 's32[]', space=sflag, size = 0x4, offset = 0, fixed_abs, tag = 'sflag constant byte address 0x0 - dummy sync flag']
  %s0 = inlined_call_operand.hbm [shape: f32[8,16,16], index: 0, kind: input, shape index: {}]
  %s1 = inlined_call_operand.hbm [shape: f32[8,8,8], index: 1, kind: output, shape index: {}]
  %s2 = sld [smem:[#allocation0]]
  $region26: #{center_crop.1} parent=0
    _
  %s4 = ssub.s32 1, %s2
  %s5 = scalar_select 0, %s4, %s2
  $region1: #{center_crop.1} parent=0
    #allocation3 [shape = 'u8[16384]{0}', space=vmem, size = 0x4000, scoped, tag = 'output window, operand 0']
    #allocation4 [shape = 's32[2]{0}', space=sflag, size = 0x8, scoped, tag = 'scoped memory for center_crop.1']
    %6 = vsyncpa [#allocation4], 0
    %s7 = scalar_lea.sflag [#allocation4], 1
    %8 = vsyncpa %s7, 0
    loop: start=0, step=1, limit=5
    $region2: #{center_crop.1} parent=1 // loop_pre_header
      _
    $region3: #{center_crop.1} parent=1 // loop_header
      %s10 = sphi 0, %s14
      %p11 = scmp.ge.s32.totalorder %s10, 5
      %s16 = sphi 0, %s26
      %s17 = sphi 0, %s22
      %s18 = sphi 0, %s16
      %s19 = sphi 0, %s17
      %s31 = sphi 0, %s33
      %s34 = sphi 0, %s31
      %s44 = sphi 0, %s34
    $region4: #{center_crop.1} parent=1 // loop_header_branch
      %13 = sbr.rel (%p11) target = $region8
    $region5: #{center_crop.1} parent=1 // loop_body
      %s15 = ssub.s32 %s10, 1
      %s20 = sadd.s32 1, %s17
      %p21 = scmp.ge.s32.totalorder %s20, 1
      %s22 = scalar_select %p21, 0, %s20
      %s23 = sadd.s32 1, %s16
      %s24 = scalar_select %p21, %s23, %s16
      %p25 = scmp.ge.s32.totalorder %s24, 4
      %s26 = scalar_select %p25, 0, %s24
      %s27 = ssub.s32 %s16, %s26
      %s28 = ssub.s32 %s17, %s22
      %s29 = sor.u32 %s27, %s28
      %p30 = scmp.eq.s32.totalorder %s29, 0
      %s32 = sadd.s32 %s31, 1
      %s33 = scalar_select %p30, %s31, %s32
      %p35 = pneg %p30
      %p36 = scmp.eq.s32.totalorder %s10, 3
      %p37 = por %p35, %p36
      %p38 = scmp.ne.s32.totalorder %s31, %s34
      %p39 = scmp.eq.s32.totalorder %s10, 0
      %p40 = por %p38, %p39
      %p41 = scmp.ne.s32.totalorder %s31, %s34
      %p42 = scmp.eq.s32.totalorder %s15, 3
      %p43 = por %p41, %p42
      %p45 = scmp.ne.s32.totalorder %s34, %s44
      %p46 = scmp.eq.s32.totalorder %s15, 0
      %p47 = por %p45, %p46
      %p48 = scmp.lt.s32.totalorder %s10, 4
      // Predicated region
      $region9: #{center_crop.1} parent=5 // pred_check
        %p49 = pneg %p48
      $region10: #{center_crop.1} parent=5 // pred_check_branch
        %51 = sbr.rel (%p49) target = $region12
      $region11: #{center_crop.1} parent=5 // pred_region
        %p52 = pneg %p40
        %p53 = pneg %p37
        %s54 = sand.u32 %s31, 1
        %s55 = scalar_lea.sflag [#allocation4], %s54
        %s56 = sand.u32 %s31, 1
        %s57 = smul.addr %s56, 16
        %s58 = scalar_lea.vmem [#allocation3], %s57
        %s59 = smul.u32 2, %s16
        %s60 = smul.u32 %s16, 2
        $region13: #{center_crop.1} parent=11
          #allocation5 [shape = 's32[1]{0}', space=sflag, size = 0x4, scoped, tag = 'scoped memory for center_crop.1']
          %s61 = smul.u32 %s60, 16
          %s62 = sadd.s32 4, %s61
          %s63 = smul.addr %s62, 16
          %s64 = scalar_lea.hbm %s0, %s63
          %s66 = sshll.u32 [#allocation2], 4
          %s67 = int_to_ptr.vmem [resolvable:$true] %s66
          %69 = dma.hbm_to_vmem [thread:$0]  %s64, 256, %s67, [#allocation5], 256, 128, 8
          %s70 = smul.u32 2, 8
          %s71 = smul.u32 %s70, 1
          %s72 = sshll.u32 %s71, 4
          %73 = dma.done [#allocation5], %s72
        %v74 = vld [vmem:[#allocation2] sm:$0xff]
        %v75 = vld [vmem:[#allocation2 + $0x8] sm:$0xff]
        %78 = vrot.lane.b32.xlu0 %v74, 124
        %v79 = vpop.permute.xlu0 %78
        %80 = vrot.lane.b32.xlu0 %v75, 124
        %v81 = vpop.permute.xlu0 %80
        %vm84 = vcmask 64512
        %85 = vst.msk [vmem:[%s58] sm:$0xff] %vm84, %v79
        %86 = vst.msk [vmem:[%s58 + $0x8] sm:$0xff] %vm84, %v81
        %s87 = sand.u32 %s31, 1
        %s88 = scalar_lea.sflag [#allocation4], %s87
        %s89 = sand.u32 %s31, 1
        %s90 = smul.addr %s89, 16
        %s91 = scalar_lea.vmem [#allocation3], %s90
        // Predicated region
        $region14: #{center_crop.1} parent=11 // pred_check
          %p92 = pneg %p37
        $region15: #{center_crop.1} parent=11 // pred_check_branch
          %94 = sbr.rel (%p92) target = $region17
        $region16: #{center_crop.1} parent=11 // pred_region
          %s95 = smul.u32 2, %s16
          %s97 = ssub.s32 256, 256
          %98 = vsyncadd %s88, %s97
          %s99 = sadd.s32 %s17, %s95
          %s100 = smul.addr %s99, 128
          %s101 = scalar_lea.hbm %s1, %s100
          %s102 = sshll.u32 %s91, 4
          %s103 = int_to_ptr.vmem [resolvable:$true] %s102
          %108 = dma.vmem_to_hbm [thread:$0]  %s103, 256, %s101, %s88, 128, 128, 8
        $region17: #{center_crop.1} parent=11 // pred_fallthru
          _
      $region12: #{center_crop.1} parent=5 // pred_fallthru
        _
      %p109 = scmp.le.s32.totalorder 1, %s10
      // Predicated region
      $region18: #{center_crop.1} parent=5 // pred_check
        %p110 = pneg %p109
      $region19: #{center_crop.1} parent=5 // pred_check_branch
        %112 = sbr.rel (%p110) target = $region21
      $region20: #{center_crop.1} parent=5 // pred_region
        %s113 = ssub.s32 %s10, 1
        // Predicated region
        $region22: #{center_crop.1} parent=20 // pred_check
          %p114 = pneg %p43
        $region23: #{center_crop.1} parent=20 // pred_check_branch
          %116 = sbr.rel (%p114) target = $region25
        $region24: #{center_crop.1} parent=20 // pred_region
          %s117 = sand.u32 %s34, 1
          %s118 = scalar_lea.sflag [#allocation4], %s117
          %s119 = sand.u32 %s34, 1
          %s120 = smul.addr %s119, 16
          %s121 = scalar_lea.vmem [#allocation3], %s120
          %122 = dma.done %s118, 256
        $region25: #{center_crop.1} parent=20 // pred_fallthru
          _
      $region21: #{center_crop.1} parent=5 // pred_fallthru
        _
    $region6: #{center_crop.1} parent=1 // loop_footer
      %s14 = sadd.s32 1, %s10
    $region7: #{center_crop.1} parent=1 // loop_footer_branch
      %9 = sbr.rel target = $region3
    $region8: #{center_crop.1} parent=1 // loop_exit
      _
    %123 = vsyncpa [#allocation4], 1
    %s124 = scalar_lea.sflag [#allocation4], 1
    %125 = vsyncpa %s124, 1

</llo_original>
